<compile_context>
chip_gen: v5e
topology: v5e:2x2
jax: 0.10.0
libtpu: 0.0.40
codegen_flags: <defaults>
</compile_context>

<pallas_src>
import functools

import jax
import jax.numpy as jnp
from jax.experimental import pallas as pl
from jax.experimental.pallas import tpu as pltpu

_SLACK_BYTES = 2 * 1024 * 1024     # VMEM slack for compiler internals
_LANE_PAD_ROW = 128 * 4            # one lane-padded row of a (tile_n, 1) f32/i32 buffer


# --------------------------------------------------------------------------- #
# Kernels
# --------------------------------------------------------------------------- #
def _gce_kernel_1d(logits_ref, labels_ref, out_ref, *, q, n_total, tile_n, mask_rows):
    """Single-pass tile: whole class axis resident, log-space GCE."""
    x = logits_ref[...].astype(jnp.float32)                      # (tile_n, C)
    lab = labels_ref[...]                                        # (tile_n, 1) int32

    m = jnp.max(x, axis=-1, keepdims=True)                       # (tile_n, 1)
    e = jnp.exp(x - m)                                           # (tile_n, C)
    denom = jnp.sum(e, axis=-1, keepdims=True)                   # (tile_n, 1)

    # One compare+select sweep over the already-live `e`, using a (1, C) iota
    # broadcast against the (tile_n, 1) labels (no (tile_n, C) iota).
    class_ids = jax.lax.broadcasted_iota(jnp.int32, (1, x.shape[-1]), 1)
    e_true = jnp.sum(jnp.where(class_ids == lab, e, 0.0), axis=-1, keepdims=True)

    # p_true^q = exp(q * (log e_true - log denom))
    log_p = jnp.log(e_true) - jnp.log(denom)                     # (tile_n, 1)
    loss = (1.0 - jnp.exp(q * log_p)) / q                        # (tile_n, 1)

    def _write(vals):
        out_ref[...] = jnp.full(out_ref.shape, jnp.sum(vals), dtype=jnp.float32)

    if not mask_rows:                 # static: N % tile_n == 0 -> no masking anywhere
        _write(loss)
    else:
        i = pl.program_id(0)
        last = pl.num_programs(0) - 1

        @pl.when(i != last)
        def _():
            _write(loss)

        @pl.when(i == last)           # remainder rows masked on the last tile only
        def _():
            row_ids = jax.lax.broadcasted_iota(jnp.int32, loss.shape, 0) + i * tile_n
            _write(jnp.where(row_ids < n_total, loss, 0.0))


def _gce_kernel_2d(logits_ref, labels_ref, out_ref, m_sc, l_sc, xt_sc, *,
                   q, n_total, c_total, tile_n, tile_c, mask_rows, mask_cols):
    """Class-axis-tiled variant (online softmax) for large vocabularies."""
    i = pl.program_id(0)
    j = pl.program_id(1)

    x = logits_ref[...].astype(jnp.float32)                      # (tile_n, tile_c)
    lab = labels_ref[...]                                        # (tile_n, 1) int32

    col_ids = jax.lax.broadcasted_iota(jnp.int32, (1, tile_c), 1) + j * tile_c
    if mask_cols:                      # static: C % tile_c != 0 -> mask padded columns
        x = jnp.where(col_ids < c_total, x, -jnp.inf)

    @pl.when(j == 0)
    def _():
        m_sc[...] = jnp.full_like(m_sc, -jnp.inf)
        l_sc[...] = jnp.zeros_like(l_sc)
        xt_sc[...] = jnp.zeros_like(xt_sc)

    m_prev = m_sc[...]
    m_new = jnp.maximum(m_prev, jnp.max(x, axis=-1, keepdims=True))
    e = jnp.exp(x - m_new)
    l_sc[...] = l_sc[...] * jnp.exp(m_prev - m_new) + jnp.sum(e, axis=-1, keepdims=True)
    # Exactly one class tile contains each row's label; accumulate its raw logit.
    xt_sc[...] += jnp.sum(jnp.where(col_ids == lab, x, 0.0), axis=-1, keepdims=True)
    m_sc[...] = m_new

    @pl.when(j == pl.num_programs(1) - 1)
    def _():
        log_p = (xt_sc[...] - m_sc[...]) - jnp.log(l_sc[...])
        loss = (1.0 - jnp.exp(q * log_p)) / q
        if mask_rows:
            row_ids = jax.lax.broadcasted_iota(jnp.int32, loss.shape, 0) + i * tile_n
            loss = jnp.where(row_ids < n_total, loss, 0.0)
        out_ref[...] = jnp.full(out_ref.shape, jnp.sum(loss), dtype=jnp.float32)


# --------------------------------------------------------------------------- #
# Tiling / VMEM heuristics
# --------------------------------------------------------------------------- #
def _vmem_budget():
    """Scoped-VMEM budget with headroom below physical capacity."""
    try:
        phys = int(getattr(pltpu.get_tpu_info(), "vmem_capacity_bytes",
                           64 * 1024 * 1024))
    except Exception:
        phys = 64 * 1024 * 1024                      # conservative (v7x-like)
    # 48 MiB on v7x (64 MiB physical), 96 MiB on v5e/v6e (128 MiB physical).
    return int(min(phys * 3 // 4, 96 * 1024 * 1024))


def _row_bytes(tile_c, itemsize, two_d):
    """VMEM bytes per batch row for one tiling choice (inputs + f32 temps)."""
    b = 2 * tile_c * itemsize        # double-buffered logits tiles
    b += 2 * _LANE_PAD_ROW           # double-buffered lane-padded (tile_n, 1) labels
    b += 3 * tile_c * 4              # in-kernel f32 intermediates (upcast, exp, select)
    if two_d:
        b += 3 * _LANE_PAD_ROW       # running max / denom / true-logit scratch
    return b


def _ceil16(v):
    return ((int(v) + 15) // 16) * 16


def _choose_tiling(n, c, itemsize, budget):
    """Pick (tile_n, tile_c).  tile_c == c means the single-pass (1-D) path."""
    n16 = _ceil16(n)
    usable = budget - _SLACK_BYTES

    # --- 1-D path: whole class axis resident per tile -----------------------
    target_rows = max(16, (8 * 1024 * 1024) // max(1, c * itemsize))  # ~8 MiB logits/tile
    fit_rows = usable // _row_bytes(c, itemsize, False)
    if fit_rows >= 256 or c <= 2048:
        tile_n = max(16, (min(target_rows, fit_rows, n16) // 16) * 16)
        # Keep >= 2 grid steps so both v7x TensorCores get work.
        while n > 16 and tile_n > 16 and pl.cdiv(n, tile_n) < 2:
            tile_n = max(16, _ceil16(tile_n // 2))
        return tile_n, c

    # --- 2-D path: tile the class axis (online softmax) for large vocabs ----
    tile_n = min(512, n16)
    while n > 16 and tile_n > 16 and pl.cdiv(n, tile_n) < 2:
        tile_n = max(16, _ceil16(tile_n // 2))
    fixed = tile_n * 5 * _LANE_PAD_ROW               # labels (2 bufs) + 3 scratch rows
    per_col = tile_n * (2 * itemsize + 3 * 4)
    tile_c = max(128, ((usable - fixed) // per_col // 128) * 128)
    tile_c = min(tile_c, ((c + 127) // 128) * 128)
    return tile_n, tile_c


# --------------------------------------------------------------------------- #
# Wrapper
# --------------------------------------------------------------------------- #
def gce_loss(logits, labels, q=0.7, tile_n=None, tile_c=None):
    """logits: (N, C) float (f32 or bf16), labels: (N,) int. Returns scalar f32."""
    n, c = logits.shape
    labels2d = labels.astype(jnp.int32).reshape(n, 1)
    itemsize = jnp.dtype(logits.dtype).itemsize

    budget = _vmem_budget()
    auto_tn, auto_tc = _choose_tiling(n, c, itemsize, budget)
    tile_n = auto_tn if tile_n is None else int(tile_n)
    tile_c = auto_tc if tile_c is None else int(tile_c)
    tile_c = min(tile_c, c)
    two_d = tile_c < c

    grid_n = pl.cdiv(n, tile_n)
    grid_c = pl.cdiv(c, tile_c) if two_d else 1
    mask_rows = (n % tile_n) != 0
    mask_cols = two_d and (c % tile_c) != 0

    vmem_need = tile_n * _row_bytes(tile_c, itemsize, two_d) + _SLACK_BYTES
    vmem_limit = int(min(budget, max(vmem_need + 4 * 1024 * 1024, 32 * 1024 * 1024)))

    cost = pl.CostEstimate(
        flops=int(5 * n * c),
        transcendentals=int(n * c),
        bytes_accessed=int(n * c * itemsize + n * 4 + grid_n * 512),
    )

    if not two_d:
        kernel = functools.partial(_gce_kernel_1d, q=q, n_total=n,
                                   tile_n=tile_n, mask_rows=mask_rows)
        grid = (grid_n,)
        in_specs = [pl.BlockSpec((tile_n, c), lambda i: (i, 0)),
                    pl.BlockSpec((tile_n, 1), lambda i: (i, 0))]
        out_specs = pl.BlockSpec((1, 1, 128), lambda i: (i, 0, 0))
        scratch = []
        dims = ("parallel",)
    else:
        kernel = functools.partial(_gce_kernel_2d, q=q, n_total=n, c_total=c,
                                   tile_n=tile_n, tile_c=tile_c,
                                   mask_rows=mask_rows, mask_cols=mask_cols)
        grid = (grid_n, grid_c)
        in_specs = [pl.BlockSpec((tile_n, tile_c), lambda i, j: (i, j)),
                    pl.BlockSpec((tile_n, 1), lambda i, j: (i, 0))]
        out_specs = pl.BlockSpec((1, 1, 128), lambda i, j: (i, 0, 0))
        scratch = [pltpu.VMEM((tile_n, 1), jnp.float32) for _ in range(3)]
        dims = ("parallel", "arbitrary")

    partials = pl.pallas_call(
        kernel,
        out_shape=jax.ShapeDtypeStruct((grid_n, 1, 128), jnp.float32),
        grid_spec=pltpu.PrefetchScalarGridSpec(
            num_scalar_prefetch=0,
            grid=grid,
            in_specs=in_specs,
            out_specs=out_specs,
            scratch_shapes=scratch,
        ),
        compiler_params=pltpu.CompilerParams(
            dimension_semantics=dims,
            vmem_limit_bytes=vmem_limit,
        ),
        cost_estimate=cost,
    )(logits, labels2d)

    # Per-tile partial sums -> mean over the true batch size.
    # TODO(synk): for extremely large N, accumulate the tile partials pairwise / in f64.
    return jnp.sum(partials[:, 0, 0]) / n


def gce_loss_ref(logits, labels, q=0.7):
    probs = jax.nn.softmax(logits.astype(jnp.float32), axis=-1)
    onehot = jax.nn.one_hot(labels, logits.shape[-1], dtype=jnp.float32)
    p_true = jnp.sum(onehot * probs, axis=-1)
    return jnp.mean((1.0 - jnp.power(p_true, q)) / q)


if __name__ == "__main__":
    key = jax.random.PRNGKey(0)
    k1, k2, k3, k4, k5, k6 = jax.random.split(key, 6)

    # Case 1: f32 logits; batch not a tile multiple (remainder masking) and the
    # tile is auto-split so the grid has >= 2 steps (both v7x TensorCores).
    N1, C1 = 24, 128
    logits1 = jax.random.normal(k1, (N1, C1), dtype=jnp.float32)
    labels1 = jax.random.randint(k2, (N1,), 0, C1, dtype=jnp.int32)
    out1 = jax.block_until_ready(gce_loss(logits1, labels1, q=0.7))
    ref1 = jax.block_until_ready(gce_loss_ref(logits1, labels1, q=0.7))
    assert jnp.allclose(out1, ref1, atol=1e-5, rtol=1e-5), (out1, ref1)

    # Case 2: bf16 logits stay bf16 at the HBM boundary (in-kernel upcast).
    N2, C2 = 40, 256
    logits2 = (4.0 * jax.random.normal(k3, (N2, C2), dtype=jnp.float32)).astype(jnp.bfloat16)
    labels2 = jax.random.randint(k4, (N2,), 0, C2, dtype=jnp.int32)
    out2 = jax.block_until_ready(gce_loss(logits2, labels2, q=0.7))
    ref2 = jax.block_until_ready(gce_loss_ref(logits2, labels2, q=0.7))
    assert jnp.allclose(out2, ref2, atol=1e-4, rtol=1e-4), (out2, ref2)

    # Case 3: force the class-tiled online-softmax path (used for large vocabs),
    # with both a remainder class tile (C % tile_c != 0) and remainder rows.
    N3, C3 = 24, 320
    logits3 = jax.random.normal(k5, (N3, C3), dtype=jnp.float32)
    labels3 = jax.random.randint(k6, (N3,), 0, C3, dtype=jnp.int32)
    out3 = jax.block_until_ready(gce_loss(logits3, labels3, q=0.7, tile_n=16, tile_c=128))
    ref3 = jax.block_until_ready(gce_loss_ref(logits3, labels3, q=0.7))
    assert jnp.allclose(out3, ref3, atol=1e-5, rtol=1e-5), (out3, ref3)

    print("KERNEL_OK")
</pallas_src>

<mosaic_0001>
module attributes {stable_mosaic.version = 11 : i64} {
  func.func @_gce_kernel_1d(%arg0: i32, %arg1: memref<16x128xf32, #tpu.memory_space<vmem>>, %arg2: memref<16x1xi32, #tpu.memory_space<vmem>>, %arg3: memref<1x1x128xf32, #tpu.memory_space<vmem>>) attributes {dimension_semantics = [#tpu.dimension_semantics<parallel>], iteration_bounds = array<i64: 2>, scalar_prefetch = 0 : i64, scratch_operands = 0 : i64, tpu.core_type = #tpu.core_type<tc>, window_params = [{transform_indices = @transform_0, window_bounds = array<i64: 16, 128>}, {transform_indices = @transform_1, window_bounds = array<i64: 16, 1>}, {transform_indices = @transform_2, window_bounds = array<i64: 1, 1, 128>}]} {
    %c0 = arith.constant 0 : index
    %c0_0 = arith.constant 0 : index
    %0 = vector.load %arg1[%c0, %c0_0] : memref<16x128xf32, #tpu.memory_space<vmem>>, vector<16x128xf32>
    %c0_1 = arith.constant 0 : index
    %c0_2 = arith.constant 0 : index
    %1 = vector.load %arg2[%c0_1, %c0_2] : memref<16x1xi32, #tpu.memory_space<vmem>>, vector<16x1xi32>
    %cst = arith.constant dense<0xFF800000> : vector<16xf32>
    %2 = vector.multi_reduction <maximumf>, %0, %cst [1] : vector<16x128xf32> to vector<16xf32>
    %3 = vector.shape_cast %2 : vector<16xf32> to vector<16x1xf32>
    %4 = vector.broadcast %3 : vector<16x1xf32> to vector<16x128xf32>
    %5 = arith.subf %0, %4 : vector<16x128xf32>
    %6 = math.exp %5 : vector<16x128xf32>
    %cst_3 = arith.constant dense<0.000000e+00> : vector<16xf32>
    %7 = vector.multi_reduction <add>, %6, %cst_3 [1] : vector<16x128xf32> to vector<16xf32>
    %8 = vector.shape_cast %7 : vector<16xf32> to vector<16x1xf32>
    %9 = tpu.iota {dimensions = array<i32: 1>} : vector<1x128xi32>
    %10 = vector.broadcast %9 : vector<1x128xi32> to vector<16x128xi32>
    %11 = vector.broadcast %1 : vector<16x1xi32> to vector<16x128xi32>
    %12 = arith.cmpi eq, %10, %11 : vector<16x128xi32>
    %cst_4 = arith.constant 0.000000e+00 : f32
    %13 = vector.broadcast %cst_4 : f32 to vector<16x128xf32>
    %14 = arith.select %12, %6, %13 : vector<16x128xi1>, vector<16x128xf32>
    %cst_5 = arith.constant dense<0.000000e+00> : vector<16xf32>
    %15 = vector.multi_reduction <add>, %14, %cst_5 [1] : vector<16x128xf32> to vector<16xf32>
    %16 = vector.shape_cast %15 : vector<16xf32> to vector<16x1xf32>
    %17 = math.log %16 : vector<16x1xf32>
    %18 = math.log %8 : vector<16x1xf32>
    %19 = arith.subf %17, %18 : vector<16x1xf32>
    %cst_6 = arith.constant 0.699999988 : f32
    %20 = vector.broadcast %cst_6 : f32 to vector<16x1xf32>
    %21 = arith.mulf %20, %19 : vector<16x1xf32>
    %22 = math.exp %21 : vector<16x1xf32>
    %cst_7 = arith.constant 1.000000e+00 : f32
    %23 = vector.broadcast %cst_7 : f32 to vector<16x1xf32>
    %24 = arith.subf %23, %22 : vector<16x1xf32>
    %cst_8 = arith.constant 0.699999988 : f32
    %25 = vector.broadcast %cst_8 : f32 to vector<16x1xf32>
    %26 = arith.divf %24, %25 : vector<16x1xf32>
    %c1_i32 = arith.constant 1 : i32
    %27 = arith.cmpi ne, %arg0, %c1_i32 : i32
    %28 = arith.extui %27 : i1 to i32
    %c0_i32 = arith.constant 0 : i32
    %29 = arith.cmpi ne, %28, %c0_i32 : i32
    scf.if %29 {
      %33 = vector.shape_cast %26 : vector<16x1xf32> to vector<1x16x1xf32>
      %cst_11 = arith.constant dense<0.000000e+00> : vector<1xf32>
      %34 = vector.multi_reduction <add>, %33, %cst_11 [1, 2] : vector<1x16x1xf32> to vector<1xf32>
      %35 = vector.shape_cast %34 : vector<1xf32> to vector<1x1x1xf32>
      %36 = vector.extract %35[0, 0, 0] : f32 from vector<1x1x1xf32>
      %37 = vector.broadcast %36 : f32 to vector<1x1x128xf32>
      %c0_12 = arith.constant 0 : index
      %c0_13 = arith.constant 0 : index
      %c0_14 = arith.constant 0 : index
      %38 = vector.load %arg3[%c0_12, %c0_13, %c0_14] : memref<1x1x128xf32, #tpu.memory_space<vmem>>, vector<1x1x128xf32>
      tpu.vector_store %arg3[%c0_12, %c0_13, %c0_14], %37 {strides = array<i32>} : memref<1x1x128xf32, #tpu.memory_space<vmem>>, vector<1x1x128xf32>,
    } else {
    }
    %c1_i32_9 = arith.constant 1 : i32
    %30 = arith.cmpi eq, %arg0, %c1_i32_9 : i32
    %31 = arith.extui %30 : i1 to i32
    %c0_i32_10 = arith.constant 0 : i32
    %32 = arith.cmpi ne, %31, %c0_i32_10 : i32
    scf.if %32 {
      %33 = tpu.iota {dimensions = array<i32: 0>} : vector<16x1xi32>
      %c16_i32 = arith.constant 16 : i32
      %34 = arith.muli %arg0, %c16_i32 : i32
      %35 = vector.broadcast %34 : i32 to vector<16x1xi32>
      %36 = arith.addi %33, %35 : vector<16x1xi32>
      %c24_i32 = arith.constant 24 : i32
      %37 = vector.broadcast %c24_i32 : i32 to vector<16x1xi32>
      %38 = arith.cmpi slt, %36, %37 : vector<16x1xi32>
      %cst_11 = arith.constant 0.000000e+00 : f32
      %39 = vector.broadcast %cst_11 : f32 to vector<16x1xf32>
      %40 = arith.select %38, %26, %39 : vector<16x1xi1>, vector<16x1xf32>
      %41 = vector.shape_cast %40 : vector<16x1xf32> to vector<1x16x1xf32>
      %cst_12 = arith.constant dense<0.000000e+00> : vector<1xf32>
      %42 = vector.multi_reduction <add>, %41, %cst_12 [1, 2] : vector<1x16x1xf32> to vector<1xf32>
      %43 = vector.shape_cast %42 : vector<1xf32> to vector<1x1x1xf32>
      %44 = vector.extract %43[0, 0, 0] : f32 from vector<1x1x1xf32>
      %45 = vector.broadcast %44 : f32 to vector<1x1x128xf32>
      %c0_13 = arith.constant 0 : index
      %c0_14 = arith.constant 0 : index
      %c0_15 = arith.constant 0 : index
      %46 = vector.load %arg3[%c0_13, %c0_14, %c0_15] : memref<1x1x128xf32, #tpu.memory_space<vmem>>, vector<1x1x128xf32>
      tpu.vector_store %arg3[%c0_13, %c0_14, %c0_15], %45 {strides = array<i32>} : memref<1x1x128xf32, #tpu.memory_space<vmem>>, vector<1x1x128xf32>,
    } else {
    }
    return
  }
  func.func @transform_0(%arg0: i32) -> (i32, i32) {
    %c0_i32 = arith.constant 0 : i32
    %c0_i32_0 = arith.constant 0 : i32
    return %arg0, %c0_i32 : i32, i32
  }
  func.func @transform_1(%arg0: i32) -> (i32, i32) {
    %c0_i32 = arith.constant 0 : i32
    %c0_i32_0 = arith.constant 0 : i32
    return %arg0, %c0_i32 : i32, i32
  }
  func.func @transform_2(%arg0: i32) -> (i32, i32, i32) {
    %c0_i32 = arith.constant 0 : i32
    %c0_i32_0 = arith.constant 0 : i32
    %c0_i32_1 = arith.constant 0 : i32
    return %arg0, %c0_i32, %c0_i32_0 : i32, i32, i32
  }
}

</mosaic_0001>

<llo_original>
// kernel: tpu_custom_call.1
$region0: #{tpu_custom_call.1}
  #allocation0 [shape = 'u32[]', space=smem, size = 0x4, offset = 0x4, fixed_abs, tag = 'smem constant byte address 0x4 - core index']
  #allocation1 [shape = 'u32[72,128]{1,0:T(1,128)}', space=vmem, size = 0x9000, scoped, tag = 'internal scratch']
  %s0 = inlined_call_operand.vmem [shape: f32[24,128], index: 0, kind: input, shape index: {}]
  %s1 = inlined_call_operand.vmem [shape: s32[24,1], index: 1, kind: input, shape index: {}]
  %s2 = inlined_call_operand.hbm [shape: f32[2,1,128], index: 2, kind: output, shape index: {}]
  %s3 = sld [smem:[#allocation0]]
  $region49: #{tpu_custom_call.1} parent=0
    _
  %s5 = ssub.s32 1, %s3
  %s6 = scalar_select 0, %s5, %s3
  $region1: #{tpu_custom_call.1} parent=0
    #allocation2 [shape = 'u8[1024]{0}', space=vmem, size = 0x400, scoped, tag = 'output window, operand 0']
    #allocation3 [shape = 's32[2]{0}', space=sflag, size = 0x8, scoped, tag = 'scoped memory for tpu_custom_call.1']
    %7 = vsyncpa [#allocation3], 0
    %s8 = scalar_lea.sflag [#allocation3], 1
    %9 = vsyncpa %s8, 0
    loop: start=0, step=1, limit=4
    $region2: #{tpu_custom_call.1} parent=1 // loop_pre_header
      _
    $region3: #{tpu_custom_call.1} parent=1 // loop_header
      %s11 = sphi 0, %s15
      %p12 = scmp.ge.s32.totalorder %s11, 4
      %s21 = sphi 0, %s23
      %s24 = sphi 0, %s21
      %s25 = sphi 0, %s24
      %s41 = sphi 0, %s25
      %s47 = sphi 0, %s49
      %s50 = sphi 0, %s47
      %s51 = sphi 0, %s50
      %s67 = sphi 0, %s51
      %s73 = sphi 0, %s75
      %s76 = sphi 0, %s73
      %s77 = sphi 0, %s76
      %s93 = sphi 0, %s77
    $region4: #{tpu_custom_call.1} parent=1 // loop_header_branch
      %14 = sbr.rel (%p12) target = $region8
    $region5: #{tpu_custom_call.1} parent=1 // loop_body
      %s16 = ssub.s32 %s11, 1
      %s17 = ssub.s32 %s11, 2
      %s18 = sadd.s32 %s11, 1
      %s19 = ssub.s32 %s11, %s18
      %p20 = scmp.eq.s32.totalorder %s19, 0
      %s22 = sadd.s32 %s21, 1
      %s23 = scalar_select %p20, %s21, %s22
      %p26 = pneg %p20
      %p27 = scmp.eq.s32.totalorder %s11, 1
      %p28 = por %p26, %p27
      %p29 = scmp.ne.s32.totalorder %s21, %s24
      %p30 = scmp.eq.s32.totalorder %s11, 0
      %p31 = por %p29, %p30
      %p32 = scmp.ne.s32.totalorder %s21, %s24
      %p33 = scmp.eq.s32.totalorder %s16, 1
      %p34 = por %p32, %p33
      %p35 = scmp.ne.s32.totalorder %s24, %s25
      %p36 = scmp.eq.s32.totalorder %s16, 0
      %p37 = por %p35, %p36
      %p38 = scmp.ne.s32.totalorder %s24, %s25
      %p39 = scmp.eq.s32.totalorder %s17, 1
      %p40 = por %p38, %p39
      %p42 = scmp.ne.s32.totalorder %s25, %s41
      %p43 = scmp.eq.s32.totalorder %s17, 0
      %p44 = por %p42, %p43
      %s45 = ssub.s32 %s11, %s18
      %p46 = scmp.eq.s32.totalorder %s45, 0
      %s48 = sadd.s32 %s47, 1
      %s49 = scalar_select %p46, %s47, %s48
      %p52 = pneg %p46
      %p53 = scmp.eq.s32.totalorder %s11, 1
      %p54 = por %p52, %p53
      %p55 = scmp.ne.s32.totalorder %s47, %s50
      %p56 = scmp.eq.s32.totalorder %s11, 0
      %p57 = por %p55, %p56
      %p58 = scmp.ne.s32.totalorder %s47, %s50
      %p59 = scmp.eq.s32.totalorder %s16, 1
      %p60 = por %p58, %p59
      %p61 = scmp.ne.s32.totalorder %s50, %s51
      %p62 = scmp.eq.s32.totalorder %s16, 0
      %p63 = por %p61, %p62
      %p64 = scmp.ne.s32.totalorder %s50, %s51
      %p65 = scmp.eq.s32.totalorder %s17, 1
      %p66 = por %p64, %p65
      %p68 = scmp.ne.s32.totalorder %s51, %s67
      %p69 = scmp.eq.s32.totalorder %s17, 0
      %p70 = por %p68, %p69
      %s71 = ssub.s32 %s11, %s18
      %p72 = scmp.eq.s32.totalorder %s71, 0
      %s74 = sadd.s32 %s73, 1
      %s75 = scalar_select %p72, %s73, %s74
      %p78 = pneg %p72
      %p79 = scmp.eq.s32.totalorder %s11, 1
      %p80 = por %p78, %p79
      %p81 = scmp.ne.s32.totalorder %s73, %s76
      %p82 = scmp.eq.s32.totalorder %s11, 0
      %p83 = por %p81, %p82
      %p84 = scmp.ne.s32.totalorder %s73, %s76
      %p85 = scmp.eq.s32.totalorder %s16, 1
      %p86 = por %p84, %p85
      %p87 = scmp.ne.s32.totalorder %s76, %s77
      %p88 = scmp.eq.s32.totalorder %s16, 0
      %p89 = por %p87, %p88
      %p90 = scmp.ne.s32.totalorder %s76, %s77
      %p91 = scmp.eq.s32.totalorder %s17, 1
      %p92 = por %p90, %p91
      %p94 = scmp.ne.s32.totalorder %s77, %s93
      %p95 = scmp.eq.s32.totalorder %s17, 0
      %p96 = por %p94, %p95
      %p97 = scmp.le.s32.totalorder 1, %s11
      %p98 = scmp.lt.s32.totalorder %s11, 3
      %p99 = pnand %p97, %p98
      %p100 = pneg %p99
      // Predicated region
      $region9: #{tpu_custom_call.1} parent=5 // pred_check
        _
      $region10: #{tpu_custom_call.1} parent=5 // pred_check_branch
        %102 = sbr.rel (%p99) target = $region12
      $region11: #{tpu_custom_call.1} parent=5 // pred_region
        %s103 = ssub.s32 %s11, 1
      $region12: #{tpu_custom_call.1} parent=5 // pred_fallthru
        _
      %p104 = scmp.lt.s32.totalorder %s11, 2
      // Predicated region
      $region13: #{tpu_custom_call.1} parent=5 // pred_check
        %p105 = pneg %p104
      $region14: #{tpu_custom_call.1} parent=5 // pred_check_branch
        %107 = sbr.rel (%p105) target = $region16
      $region15: #{tpu_custom_call.1} parent=5 // pred_region
        // Predicated region
        $region17: #{tpu_custom_call.1} parent=15 // pred_check
          %p108 = pneg %p31
        $region18: #{tpu_custom_call.1} parent=15 // pred_check_branch
          %110 = sbr.rel (%p108) target = $region20
        $region19: #{tpu_custom_call.1} parent=15 // pred_region
          %s111 = smul.u32 2, %s11
          %s112 = ssub.s32 3, %s111
          %p113 = scmp.lt.s32.totalorder %s112, 2
          %s114 = scalar_select %p113, %s112, 2
          %s115 = smul.u32 8, %s114
          %p116 = scmp.lt.s32.totalorder %s111, 2
          %s117 = scalar_select %p116, %s111, 2
          %s118 = smul.addr %s117, 8
          %s119 = scalar_lea.vmem %s0, %s118
          %s120 = smul.u32 2, %s11
          %s121 = ssub.s32 3, %s120
          %p122 = scmp.lt.s32.totalorder %s121, 2
          %s123 = scalar_select %p122, %s121, 2
          %s124 = smul.u32 8, %s123
        $region20: #{tpu_custom_call.1} parent=15 // pred_fallthru
          _
        // Predicated region
        $region21: #{tpu_custom_call.1} parent=15 // pred_check
          %p125 = pneg %p57
        $region22: #{tpu_custom_call.1} parent=15 // pred_check_branch
          %127 = sbr.rel (%p125) target = $region24
        $region23: #{tpu_custom_call.1} parent=15 // pred_region
          %s128 = smul.u32 2, %s11
          %s129 = ssub.s32 3, %s128
          %p130 = scmp.lt.s32.totalorder %s129, 2
          %s131 = scalar_select %p130, %s129, 2
          %s132 = smul.u32 8, %s131
          %p133 = scmp.lt.s32.totalorder %s128, 2
          %s134 = scalar_select %p133, %s128, 2
          %s135 = smul.addr %s134, 8
          %s136 = scalar_lea.vmem %s1, %s135
          %s137 = smul.u32 2, %s11
          %s138 = ssub.s32 3, %s137
          %p139 = scmp.lt.s32.totalorder %s138, 2
          %s140 = scalar_select %p139, %s138, 2
          %s141 = smul.u32 8, %s140
        $region24: #{tpu_custom_call.1} parent=15 // pred_fallthru
          _
      $region16: #{tpu_custom_call.1} parent=5 // pred_fallthru
        _
      %p142 = scmp.le.s32.totalorder 1, %s11
      %p143 = scmp.lt.s32.totalorder %s11, 3
      %p144 = pnand %p142, %p143
      %p145 = pneg %p144
      // Predicated region
      $region25: #{tpu_custom_call.1} parent=5 // pred_check
        _
      $region26: #{tpu_custom_call.1} parent=5 // pred_check_branch
        %147 = sbr.rel (%p144) target = $region28
      $region27: #{tpu_custom_call.1} parent=5 // pred_region
        %s148 = ssub.s32 %s11, 1
        %s149 = smul.u32 2, %s16
        %s150 = ssub.s32 3, %s149
        %p151 = scmp.lt.s32.totalorder %s150, 2
        %s152 = scalar_select %p151, %s150, 2
        %s153 = smul.u32 8, %s152
        %p154 = scmp.lt.s32.totalorder %s149, 2
        %s155 = scalar_select %p154, %s149, 2
        %s156 = smul.addr %s155, 8
        %s157 = scalar_lea.vmem %s0, %s156
        %p158 = pneg %p37
        %p159 = pneg %p34
        %s160 = smul.u32 2, %s16
        %s161 = ssub.s32 3, %s160
        %p162 = scmp.lt.s32.totalorder %s161, 2
        %s163 = scalar_select %p162, %s161, 2
        %s164 = smul.u32 8, %s163
        %p165 = scmp.lt.s32.totalorder %s160, 2
        %s166 = scalar_select %p165, %s160, 2
        %s167 = smul.addr %s166, 8
        %s168 = scalar_lea.vmem %s1, %s167
        %p169 = pneg %p63
        %p170 = pneg %p60
        %p171 = pneg %p89
        %p172 = pneg %p86
        %s173 = sand.u32 %s76, 1
        %s174 = scalar_lea.sflag [#allocation3], %s173
        %s175 = sand.u32 %s76, 1
        %s176 = scalar_lea.vmem [#allocation2], %s175
        %s177 = smul.u32 2, %s16
        %s178 = ssub.s32 3, %s177
        %p179 = scmp.lt.s32.totalorder %s178, 2
        %s180 = scalar_select %p179, %s178, 2
        %s181 = smul.u32 8, %s180
        %p182 = scmp.lt.s32.totalorder %s177, 2
        %s183 = scalar_select %p182, %s177, 2
        %s184 = smul.addr %s183, 8
        %s185 = scalar_lea.vmem %s0, %s184
        %s186 = smul.u32 2, %s16
        %s187 = ssub.s32 3, %s186
        %p188 = scmp.lt.s32.totalorder %s187, 2
        %s189 = scalar_select %p188, %s187, 2
        %s190 = smul.u32 8, %s189
        %s191 = smul.u32 2, %s16
        %s192 = ssub.s32 3, %s191
        %p193 = scmp.lt.s32.totalorder %s192, 2
        %s194 = scalar_select %p193, %s192, 2
        %s195 = smul.u32 8, %s194
        %p196 = scmp.lt.s32.totalorder %s191, 2
        %s197 = scalar_select %p196, %s191, 2
        %s198 = smul.addr %s197, 8
        %s199 = scalar_lea.vmem %s1, %s198
        %s200 = smul.u32 2, %s16
        %s201 = ssub.s32 3, %s200
        %p202 = scmp.lt.s32.totalorder %s201, 2
        %s203 = scalar_select %p202, %s201, 2
        %s204 = smul.u32 8, %s203
        %v205 = vld [vmem:[%s185] sm:$0xff]
        %v206 = vld [vmem:[%s185 + $0x8] sm:$0xff]
        %v207 = vld [vmem:[%s199] sm:$0xff]
        %v208 = vld [vmem:[%s199 + $0x8] sm:$0xff]
        %209 = vmax.xlane.f32.xlu0 %v205
        %v210 = vpop.xlane.xlu0 %209
        %211 = vmax.xlane.f32.xlu0 %v206
        %v212 = vpop.xlane.xlu0 %211
        %v213 = vsub.f32 %v205, %v210
        %v214 = vsub.f32 %v206, %v212
        %v215 = vmul.f32 %v213, 1.442695
        %v216 = vpow.pop %v215
        %v217 = vmul.f32 %v214, 1.442695
        %v218 = vpow.pop %v217
        %219 = vadd.xlane.f32.xlu0 %v216
        %v220 = vpop.xlane.xlu0 %219
        %221 = vadd.xlane.f32.xlu0 %v218
        %v222 = vpop.xlane.xlu0 %221
        %v223 = vlaneseq
        %v224 = vand.u32 %v223, 127
        %225 = vset.pattern.permute.xlu0 0
        %226 = vperm.xlu0 %225, %v207
        %v227 = vpop.permute.xlu0 %226
        %228 = vset.pattern.permute.xlu0 0
        %229 = vperm.xlu0 %228, %v208
        %v230 = vpop.permute.xlu0 %229
        %vm231 = vcmp.eq.s32.totalorder %v224, %v227
        %vm232 = vcmp.eq.s32.totalorder %v224, %v230
        %v233 = vsel %vm231, %v216, 0.0
        %v234 = vsel %vm232, %v218, 0.0
        %235 = vadd.xlane.f32.xlu0 %v233
        %v236 = vpop.xlane.xlu0 %235
        %237 = vadd.xlane.f32.xlu0 %v234
        %v238 = vpop.xlane.xlu0 %237
        %v239 = vlog2.pop %v236
        %v240 = vmul.f32 %v239, 0.6931472
        %v241 = vlog2.pop %v238
        %v242 = vmul.f32 %v241, 0.6931472
        %v243 = vlog2.pop %v220
        %v244 = vmul.f32 %v243, 0.6931472
        %v245 = vlog2.pop %v222
        %v246 = vmul.f32 %v245, 0.6931472
        %v247 = vsub.f32 %v240, %v244
        %v248 = vsub.f32 %v242, %v246
        %v249 = vmul.f32 %v247, 0.7
        %v250 = vmul.f32 %v248, 0.7
        %v251 = vmul.f32 %v249, 1.442695
        %v252 = vpow.pop %v251
        %v253 = vmul.f32 %v250, 1.442695
        %v254 = vpow.pop %v253
        %v255 = vsub.f32 1.0, %v252
        %v256 = vsub.f32 1.0, %v254
        %v257 = vrcp.pop 0.7
        %v258 = vmul.f32 0.7, %v257
        %v259 = vsub.f32 1.0, %v258
        %v260 = vmul.f32 %v257, %v259
        %v261 = vadd.f32 %v257, %v260
        %vm262 = vweird.f32 %v257
        %v263 = vsel %vm262, %v257, %v261
        %v264 = vmul.f32 %v255, %v263
        %v265 = vmul.f32 %v256, %v263
        %p266 = scmp.ne.s32.totalorder %s16, 1
        // Predicated region
        $region29: #{tpu_custom_call.1} parent=27 // pred_check
          %p267 = pneg %p266
        $region30: #{tpu_custom_call.1} parent=27 // pred_check_branch
          %269 = sbr.rel (%p267) target = $region32
        $region31: #{tpu_custom_call.1} parent=27 // pred_region
          %vm270 = vcmask 7168
          %v271 = vsel %vm270, %v264, 0.0
          %v272 = vsel %vm270, %v265, 0.0
          %v273 = vadd.f32 %v271, %v272
          %274 = vadd.xlane.f32.xlu0 %v273
          %v275 = vpop.xlane.xlu0 %274
          %v276 = vrot.slane %v275, 4
          %v277 = vadd.f32 %v275, %v276
          %v278 = vrot.slane %v277, 2
          %v279 = vadd.f32 %v277, %v278
          %v280 = vrot.slane %v279, 1
          %v281 = vadd.f32 %v279, %v280
          %s282 = vtos %v281
          %v283 = vstv %s282
          %284 = vst [vmem:[%s176] sm:$0x1] %v283
        $region32: #{tpu_custom_call.1} parent=27 // pred_fallthru
          _
        %p285 = scmp.eq.s32.totalorder %s16, 1
        // Predicated region
        $region33: #{tpu_custom_call.1} parent=27 // pred_check
          %p286 = pneg %p285
        $region34: #{tpu_custom_call.1} parent=27 // pred_check_branch
          %288 = sbr.rel (%p286) target = $region36
        $region35: #{tpu_custom_call.1} parent=27 // pred_region
          %v289 = vlaneseq
          %v290 = vshrl.u32 %v289, 7
          %v291 = vadd.s32 %v290, 8
          %s292 = smul.u32 %s16, 16
          %v293 = vstv %s292
          %v294 = vadd.s32 %v290, %v293
          %v295 = vadd.s32 %v291, %v293
          %vm296 = vcmp.lt.s32.totalorder %v294, 24
          %vm297 = vcmp.lt.s32.totalorder %v295, 24
          %v298 = vsel %vm296, %v264, 0.0
          %v299 = vsel %vm297, %v265, 0.0
          %vm300 = vcmask 7168
          %v301 = vsel %vm300, %v298, 0.0
          %v302 = vsel %vm300, %v299, 0.0
          %v303 = vadd.f32 %v301, %v302
          %304 = vadd.xlane.f32.xlu0 %v303
          %v305 = vpop.xlane.xlu0 %304
          %v306 = vrot.slane %v305, 4
          %v307 = vadd.f32 %v305, %v306
          %v308 = vrot.slane %v307, 2
          %v309 = vadd.f32 %v307, %v308
          %v310 = vrot.slane %v309, 1
          %v311 = vadd.f32 %v309, %v310
          %s312 = vtos %v311
          %v313 = vstv %s312
          %314 = vst [vmem:[%s176] sm:$0x1] %v313
        $region36: #{tpu_custom_call.1} parent=27 // pred_fallthru
          _
        %s315 = sand.u32 %s76, 1
        %s316 = scalar_lea.sflag [#allocation3], %s315
        %s317 = sand.u32 %s76, 1
        %s318 = scalar_lea.vmem [#allocation2], %s317
        // Predicated region
        $region37: #{tpu_custom_call.1} parent=27 // pred_check
          %p319 = pneg %p86
        $region38: #{tpu_custom_call.1} parent=27 // pred_check_branch
          %321 = sbr.rel (%p319) target = $region40
        $region39: #{tpu_custom_call.1} parent=27 // pred_region
          %323 = vsyncadd %s316, 0
          %s324 = scalar_lea.hbm %s2, %s16
          %s326 = sshll.u32 %s318, 4
          %s327 = int_to_ptr.vmem [resolvable:$true] %s326
          %s328 = sshll.u32 %s324, 4
          %s329 = int_to_ptr.hbm [resolvable:$true] %s328
          %331 = dma.vmem_to_hbm [thread:$0]  %s327, 16, %s329, %s316
        $region40: #{tpu_custom_call.1} parent=27 // pred_fallthru
          _
      $region28: #{tpu_custom_call.1} parent=5 // pred_fallthru
        _
      %p332 = scmp.le.s32.totalorder 2, %s11
      // Predicated region
      $region41: #{tpu_custom_call.1} parent=5 // pred_check
        %p333 = pneg %p332
      $region42: #{tpu_custom_call.1} parent=5 // pred_check_branch
        %335 = sbr.rel (%p333) target = $region44
      $region43: #{tpu_custom_call.1} parent=5 // pred_region
        %s336 = ssub.s32 %s11, 2
        // Predicated region
        $region45: #{tpu_custom_call.1} parent=43 // pred_check
          %p337 = pneg %p92
        $region46: #{tpu_custom_call.1} parent=43 // pred_check_branch
          %339 = sbr.rel (%p337) target = $region48
        $region47: #{tpu_custom_call.1} parent=43 // pred_region
          %s340 = sand.u32 %s77, 1
          %s341 = scalar_lea.sflag [#allocation3], %s340
          %s342 = sand.u32 %s77, 1
          %s343 = scalar_lea.vmem [#allocation2], %s342
          %345 = dma.done %s341, 16
        $region48: #{tpu_custom_call.1} parent=43 // pred_fallthru
          _
      $region44: #{tpu_custom_call.1} parent=5 // pred_fallthru
        _
    $region6: #{tpu_custom_call.1} parent=1 // loop_footer
      %s15 = sadd.s32 1, %s11
    $region7: #{tpu_custom_call.1} parent=1 // loop_footer_branch
      %10 = sbr.rel target = $region3
    $region8: #{tpu_custom_call.1} parent=1 // loop_exit
      _
    %346 = vsyncpa [#allocation3], 1
    %s347 = scalar_lea.sflag [#allocation3], 1
    %348 = vsyncpa %s347, 1

</llo_original>
